<compile_context>
chip_gen: v7x
topology: tpu7x:2x2x1
jax: 0.10.0
libtpu: 0.0.40
codegen_flags: <defaults>
</compile_context>

<pallas_src>
import functools
import math

import jax
import jax.numpy as jnp
from jax.experimental import pallas as pl
from jax.experimental.pallas import tpu as pltpu

LN_EPS = 1e-5


def _round_up(x, m):
    return (x + m - 1) // m * m


def _vmem_limit_bytes():
    """~85% of physical VMEM, capped at 100 MiB (conservative 64 MiB fallback)."""
    cap = 64 * 1024 * 1024  # v7x physical VMEM per TC (smallest generation)
    try:
        info = pltpu.get_tpu_info()
        cap = int(getattr(info, "vmem_capacity_bytes", cap))
    except Exception:
        pass
    return min(int(cap * 0.85), 100 * 1024 * 1024)


def _fits_vmem(tile_m, tile_k, cout_p, limit_bytes):
    """Conservative (all-f32, double-buffered) estimate of resident VMEM."""
    f32 = 4
    need = (
        2 * tile_m * tile_k * f32      # x tile, double-buffered
        + 2 * tile_k * cout_p * f32    # weight tile, double-buffered (worst case)
        + 2 * tile_m * cout_p * f32    # output tile, double-buffered
        + tile_m * cout_p * f32        # f32 accumulator scratch
        + 6 * cout_p * f32             # bias / gamma / beta
    )
    return need <= int(limit_bytes * 0.8)


def _block_spec(shape, index_map, single_buffer=False):
    """BlockSpec; request single-buffering for grid-invariant operands if possible."""
    if single_buffer:
        buffered = getattr(pl, "Buffered", None)
        if buffered is not None:
            try:
                return pl.BlockSpec(shape, index_map, pipeline_mode=buffered(1))
            except TypeError:  # jax build without pipeline_mode kwarg
                pass
    return pl.BlockSpec(shape, index_map)


def _lln_kernel(x_ref, w_ref, b_ref, g_ref, beta_ref, o_ref, acc_ref, *,
                cout_real, cout_padded, eps):
    k = pl.program_id(1)

    @pl.when(k == 0)
    def _init():
        acc_ref[...] = jnp.zeros_like(acc_ref)

    # Linear: accumulate x @ W in f32 across the K grid axis (MXU).
    acc_ref[...] += jnp.dot(x_ref[...], w_ref[...],
                            preferred_element_type=jnp.float32)

    @pl.when(k == pl.num_programs(1) - 1)
    def _finalize():
        y = acc_ref[...] + b_ref[...].astype(jnp.float32)
        inv_c = jnp.float32(1.0 / cout_real)
        # Padded output columns of y are exactly zero (zero weight columns and
        # zero bias), so a plain lane reduction equals the sum over real Cout.
        mean = jnp.sum(y, axis=-1, keepdims=True) * inv_c
        centered = y - mean
        if cout_padded != cout_real:
            col = jax.lax.broadcasted_iota(jnp.int32, centered.shape, 1)
            centered = jnp.where(col < cout_real, centered, 0.0)
        var = jnp.sum(centered * centered, axis=-1, keepdims=True) * inv_c
        yhat = centered * jax.lax.rsqrt(var + eps)
        out = (yhat * g_ref[...].astype(jnp.float32)
               + beta_ref[...].astype(jnp.float32))
        o_ref[...] = out.astype(o_ref.dtype)


@functools.partial(
    jax.jit, static_argnames=("tile_m", "max_tile_k", "single_buffer_invariants"))
def lln_forward(x, w, b, gamma, beta, *, tile_m=512, max_tile_k=512,
                single_buffer_invariants=True):
    """x: (..., Cin); w: (Cin, Cout) (torch Linear weight transposed); b/gamma/beta: (Cout,)."""
    orig_shape = x.shape
    cin = orig_shape[-1]
    cout = w.shape[1]
    rows = math.prod(orig_shape[:-1])
    x2 = x.reshape(rows, cin)

    # --- K (reduction) tiling: bound the weight block held in VMEM. ---
    if cin <= max_tile_k:
        tile_k, cin_p = cin, cin
    else:
        tile_k = max_tile_k
        cin_p = _round_up(cin, tile_k)
    k_steps = cin_p // tile_k

    # --- lane-dense output: pad Cout to a multiple of 128 (unmasked vst). ---
    cout_p = _round_up(cout, 128)

    # --- row tiling: large MXU-aligned tiles bounded by the VMEM budget. ---
    vmem_limit = _vmem_limit_bytes()
    tm = max(8, _round_up(min(tile_m, _round_up(rows, 8)), 8))
    while tm > 8 and not _fits_vmem(tm, tile_k, cout_p, vmem_limit):
        tm = max(8, _round_up(tm // 2, 8))
    rows_p = _round_up(rows, tm)

    # --- zero padding (does not change x @ W; padded rows/cols sliced off). ---
    pad_rows, pad_cin, pad_cout = rows_p - rows, cin_p - cin, cout_p - cout
    if pad_rows or pad_cin:
        x2 = jnp.pad(x2, ((0, pad_rows), (0, pad_cin)))
    w_p = jnp.pad(w, ((0, pad_cin), (0, pad_cout))) if (pad_cin or pad_cout) else w
    b2 = jnp.pad(b, (0, pad_cout)).reshape(1, cout_p)
    g2 = jnp.pad(gamma, (0, pad_cout)).reshape(1, cout_p)
    beta2 = jnp.pad(beta, (0, pad_cout)).reshape(1, cout_p)

    weight_invariant = single_buffer_invariants and (k_steps == 1)
    kernel = functools.partial(_lln_kernel, cout_real=cout, cout_padded=cout_p,
                               eps=LN_EPS)

    out = pl.pallas_call(
        kernel,
        out_shape=jax.ShapeDtypeStruct((rows_p, cout_p), x.dtype),
        grid_spec=pltpu.PrefetchScalarGridSpec(
            num_scalar_prefetch=0,
            grid=(rows_p // tm, k_steps),            # rows parallel, K reduction last
            in_specs=[
                pl.BlockSpec((tm, tile_k), lambda i, k: (i, k)),
                _block_spec((tile_k, cout_p), lambda i, k: (k, 0),
                            single_buffer=weight_invariant),
                _block_spec((1, cout_p), lambda i, k: (0, 0),
                            single_buffer=single_buffer_invariants),
                _block_spec((1, cout_p), lambda i, k: (0, 0),
                            single_buffer=single_buffer_invariants),
                _block_spec((1, cout_p), lambda i, k: (0, 0),
                            single_buffer=single_buffer_invariants),
            ],
            out_specs=pl.BlockSpec((tm, cout_p), lambda i, k: (i, 0)),
            scratch_shapes=[pltpu.VMEM((tm, cout_p), jnp.float32)],
        ),
        compiler_params=pltpu.CompilerParams(
            dimension_semantics=("parallel", "arbitrary"),
            vmem_limit_bytes=vmem_limit,
        ),
    )(x2, w_p, b2, g2, beta2)

    out = out[:rows, :cout]
    return out.reshape(*orig_shape[:-1], cout)


def _forward(x, w, b, gamma, beta, **kw):
    try:
        return lln_forward(x, w, b, gamma, beta, **kw)
    except Exception:
        # Fallback if this jax build rejects single-buffered pipeline_mode.
        return lln_forward(x, w, b, gamma, beta,
                           single_buffer_invariants=False, **kw)


def init_lln_params(key, inchannel, outchannel, dtype=jnp.float32):
    """Deterministic init mimicking torch defaults (kaiming-uniform-ish)."""
    kw, kb = jax.random.split(key)
    bound = 1.0 / (inchannel ** 0.5)
    # Stored as (Cin, Cout) == torch Linear weight transposed.
    w = jax.random.uniform(kw, (inchannel, outchannel), dtype, -bound, bound)
    b = jax.random.uniform(kb, (outchannel,), dtype, -bound, bound)
    gamma = jnp.ones((outchannel,), dtype)   # LayerNorm weight
    beta = jnp.zeros((outchannel,), dtype)   # LayerNorm bias
    return w, b, gamma, beta


def lln_reference(x, w, b, gamma, beta):
    y = jnp.einsum("...i,io->...o", x, w) + b
    mean = jnp.mean(y, axis=-1, keepdims=True)
    var = jnp.mean((y - mean) ** 2, axis=-1, keepdims=True)
    yhat = (y - mean) * jax.lax.rsqrt(var + LN_EPS)
    return yhat * gamma + beta


if __name__ == "__main__":
    key = jax.random.PRNGKey(0)
    k_x, k_p, k_x2, k_p2 = jax.random.split(key, 4)

    # Small shapes consistent with the module: x (B, N, Cin), Linear 16 -> 32.
    B, N, CIN, COUT = 2, 8, 16, 32
    x = jax.random.normal(k_x, (B, N, CIN), jnp.float32)
    w, b, gamma, beta = init_lln_params(k_p, CIN, COUT)
    out = jax.block_until_ready(_forward(x, w, b, gamma, beta))
    ref = lln_reference(x, w, b, gamma, beta)
    assert out.shape == (B, N, COUT), out.shape
    assert jnp.allclose(out, ref, atol=2e-4, rtol=2e-4), float(
        jnp.max(jnp.abs(out - ref)))

    # Second check: exercises row/K/Cout padding, the K-reduction grid axis and
    # multi-row-tile pipelining.  Looser tolerance: the MXU kernel and the XLA
    # reference may use different f32 matmul pass counts.
    B2, N2, CIN2, COUT2 = 2, 300, 600, 96
    x_l = jax.random.normal(k_x2, (B2, N2, CIN2), jnp.float32)
    w_l, b_l, g_l, be_l = init_lln_params(k_p2, CIN2, COUT2)
    out_l = jax.block_until_ready(_forward(x_l, w_l, b_l, g_l, be_l))
    ref_l = lln_reference(x_l, w_l, b_l, g_l, be_l)
    assert out_l.shape == (B2, N2, COUT2), out_l.shape
    assert jnp.allclose(out_l, ref_l, atol=2e-2, rtol=2e-2), float(
        jnp.max(jnp.abs(out_l - ref_l)))

    print("KERNEL_OK")
</pallas_src>

<mosaic_0001>
module attributes {stable_mosaic.version = 11 : i64} {
  func.func @_lln_kernel(%arg0: i32, %arg1: i32, %arg2: memref<16x16xf32, #tpu.memory_space<vmem>>, %arg3: memref<16x128xf32, #tpu.memory_space<vmem>>, %arg4: memref<1x128xf32, #tpu.memory_space<vmem>>, %arg5: memref<1x128xf32, #tpu.memory_space<vmem>>, %arg6: memref<1x128xf32, #tpu.memory_space<vmem>>, %arg7: memref<16x128xf32, #tpu.memory_space<vmem>>, %arg8: memref<16x128xf32, #tpu.memory_space<vmem>>) attributes {dimension_semantics = [#tpu.dimension_semantics<parallel>, #tpu.dimension_semantics<arbitrary>], iteration_bounds = array<i64: 1, 1>, scalar_prefetch = 0 : i64, scratch_operands = 1 : i64, tpu.core_type = #tpu.core_type<tc>, window_params = [{transform_indices = @transform_0, window_bounds = array<i64: 16, 16>}, {pipeline_mode = #tpu.pipeline_mode<synchronous>, transform_indices = @transform_1, window_bounds = array<i64: 16, 128>}, {pipeline_mode = #tpu.pipeline_mode<synchronous>, transform_indices = @transform_2, window_bounds = array<i64: 1, 128>}, {pipeline_mode = #tpu.pipeline_mode<synchronous>, transform_indices = @transform_3, window_bounds = array<i64: 1, 128>}, {pipeline_mode = #tpu.pipeline_mode<synchronous>, transform_indices = @transform_4, window_bounds = array<i64: 1, 128>}, {transform_indices = @transform_5, window_bounds = array<i64: 16, 128>}]} {
    %c0_i32 = arith.constant 0 : i32
    %0 = arith.cmpi eq, %arg1, %c0_i32 : i32
    %1 = arith.extui %0 : i1 to i32
    %c0_i32_0 = arith.constant 0 : i32
    %2 = arith.cmpi ne, %1, %c0_i32_0 : i32
    scf.if %2 {
      %cst_10 = arith.constant 0.000000e+00 : f32
      %12 = vector.broadcast %cst_10 : f32 to vector<16x128xf32>
      %c0_11 = arith.constant 0 : index
      %c0_12 = arith.constant 0 : index
      %13 = vector.load %arg8[%c0_11, %c0_12] : memref<16x128xf32, #tpu.memory_space<vmem>>, vector<16x128xf32>
      tpu.vector_store %arg8[%c0_11, %c0_12], %12 {strides = array<i32>} : memref<16x128xf32, #tpu.memory_space<vmem>>, vector<16x128xf32>,
    } else {
    }
    %c0 = arith.constant 0 : index
    %c0_1 = arith.constant 0 : index
    %3 = vector.load %arg8[%c0, %c0_1] : memref<16x128xf32, #tpu.memory_space<vmem>>, vector<16x128xf32>
    %c0_2 = arith.constant 0 : index
    %c0_3 = arith.constant 0 : index
    %4 = vector.load %arg2[%c0_2, %c0_3] : memref<16x16xf32, #tpu.memory_space<vmem>>, vector<16x16xf32>
    %c0_4 = arith.constant 0 : index
    %c0_5 = arith.constant 0 : index
    %5 = vector.load %arg3[%c0_4, %c0_5] : memref<16x128xf32, #tpu.memory_space<vmem>>, vector<16x128xf32>
    %cst = arith.constant dense<0.000000e+00> : vector<16x128xf32>
    %6 = tpu.matmul %4, %5, %cst {dimension_numbers = #tpu.dot_dimension_numbers<[1], [0], [0], [1], [0, 0, 1, 1], [], []>} : vector<16x16xf32>, vector<16x128xf32>, vector<16x128xf32> -> vector<16x128xf32>
    %7 = arith.addf %3, %6 : vector<16x128xf32>
    %c0_6 = arith.constant 0 : index
    %c0_7 = arith.constant 0 : index
    %8 = vector.load %arg8[%c0_6, %c0_7] : memref<16x128xf32, #tpu.memory_space<vmem>>, vector<16x128xf32>
    tpu.vector_store %arg8[%c0_6, %c0_7], %7 {strides = array<i32>} : memref<16x128xf32, #tpu.memory_space<vmem>>, vector<16x128xf32>,
    %c0_i32_8 = arith.constant 0 : i32
    %9 = arith.cmpi eq, %arg1, %c0_i32_8 : i32
    %10 = arith.extui %9 : i1 to i32
    %c0_i32_9 = arith.constant 0 : i32
    %11 = arith.cmpi ne, %10, %c0_i32_9 : i32
    scf.if %11 {
      %c0_10 = arith.constant 0 : index
      %c0_11 = arith.constant 0 : index
      %12 = vector.load %arg8[%c0_10, %c0_11] : memref<16x128xf32, #tpu.memory_space<vmem>>, vector<16x128xf32>
      %c0_12 = arith.constant 0 : index
      %c0_13 = arith.constant 0 : index
      %13 = vector.load %arg4[%c0_12, %c0_13] : memref<1x128xf32, #tpu.memory_space<vmem>>, vector<1x128xf32>
      %14 = vector.broadcast %13 : vector<1x128xf32> to vector<16x128xf32>
      %15 = arith.addf %12, %14 : vector<16x128xf32>
      %cst_14 = arith.constant dense<0.000000e+00> : vector<16xf32>
      %16 = vector.multi_reduction <add>, %15, %cst_14 [1] : vector<16x128xf32> to vector<16xf32>
      %17 = vector.shape_cast %16 : vector<16xf32> to vector<16x1xf32>
      %cst_15 = arith.constant 3.125000e-02 : f32
      %18 = vector.broadcast %cst_15 : f32 to vector<16x1xf32>
      %19 = arith.mulf %17, %18 : vector<16x1xf32>
      %20 = vector.broadcast %19 : vector<16x1xf32> to vector<16x128xf32>
      %21 = arith.subf %15, %20 : vector<16x128xf32>
      %22 = tpu.iota {dimensions = array<i32: 1>} : vector<16x128xi32>
      %c32_i32 = arith.constant 32 : i32
      %23 = vector.broadcast %c32_i32 : i32 to vector<16x128xi32>
      %24 = arith.cmpi slt, %22, %23 : vector<16x128xi32>
      %cst_16 = arith.constant 0.000000e+00 : f32
      %25 = vector.broadcast %cst_16 : f32 to vector<16x128xf32>
      %26 = arith.select %24, %21, %25 : vector<16x128xi1>, vector<16x128xf32>
      %27 = arith.mulf %26, %26 : vector<16x128xf32>
      %cst_17 = arith.constant dense<0.000000e+00> : vector<16xf32>
      %28 = vector.multi_reduction <add>, %27, %cst_17 [1] : vector<16x128xf32> to vector<16xf32>
      %29 = vector.shape_cast %28 : vector<16xf32> to vector<16x1xf32>
      %cst_18 = arith.constant 3.125000e-02 : f32
      %30 = vector.broadcast %cst_18 : f32 to vector<16x1xf32>
      %31 = arith.mulf %29, %30 : vector<16x1xf32>
      %cst_19 = arith.constant 9.99999974E-6 : f32
      %32 = vector.broadcast %cst_19 : f32 to vector<16x1xf32>
      %33 = arith.addf %31, %32 : vector<16x1xf32>
      %34 = math.rsqrt %33 : vector<16x1xf32>
      %35 = vector.broadcast %34 : vector<16x1xf32> to vector<16x128xf32>
      %36 = arith.mulf %26, %35 : vector<16x128xf32>
      %c0_20 = arith.constant 0 : index
      %c0_21 = arith.constant 0 : index
      %37 = vector.load %arg5[%c0_20, %c0_21] : memref<1x128xf32, #tpu.memory_space<vmem>>, vector<1x128xf32>
      %38 = vector.broadcast %37 : vector<1x128xf32> to vector<16x128xf32>
      %39 = arith.mulf %36, %38 : vector<16x128xf32>
      %c0_22 = arith.constant 0 : index
      %c0_23 = arith.constant 0 : index
      %40 = vector.load %arg6[%c0_22, %c0_23] : memref<1x128xf32, #tpu.memory_space<vmem>>, vector<1x128xf32>
      %41 = vector.broadcast %40 : vector<1x128xf32> to vector<16x128xf32>
      %42 = arith.addf %39, %41 : vector<16x128xf32>
      %c0_24 = arith.constant 0 : index
      %c0_25 = arith.constant 0 : index
      %43 = vector.load %arg7[%c0_24, %c0_25] : memref<16x128xf32, #tpu.memory_space<vmem>>, vector<16x128xf32>
      tpu.vector_store %arg7[%c0_24, %c0_25], %42 {strides = array<i32>} : memref<16x128xf32, #tpu.memory_space<vmem>>, vector<16x128xf32>,
    } else {
    }
    return
  }
  func.func @transform_0(%arg0: i32, %arg1: i32) -> (i32, i32) {
    %c0_i32 = arith.constant 0 : i32
    return %arg0, %arg1 : i32, i32
  }
  func.func @transform_1(%arg0: i32, %arg1: i32) -> (i32, i32) {
    %c0_i32 = arith.constant 0 : i32
    %c0_i32_0 = arith.constant 0 : i32
    return %arg1, %c0_i32 : i32, i32
  }
  func.func @transform_2(%arg0: i32, %arg1: i32) -> (i32, i32) {
    %c0_i32 = arith.constant 0 : i32
    %c0_i32_0 = arith.constant 0 : i32
    %c0_i32_1 = arith.constant 0 : i32
    return %c0_i32, %c0_i32_0 : i32, i32
  }
  func.func @transform_3(%arg0: i32, %arg1: i32) -> (i32, i32) {
    %c0_i32 = arith.constant 0 : i32
    %c0_i32_0 = arith.constant 0 : i32
    %c0_i32_1 = arith.constant 0 : i32
    return %c0_i32, %c0_i32_0 : i32, i32
  }
  func.func @transform_4(%arg0: i32, %arg1: i32) -> (i32, i32) {
    %c0_i32 = arith.constant 0 : i32
    %c0_i32_0 = arith.constant 0 : i32
    %c0_i32_1 = arith.constant 0 : i32
    return %c0_i32, %c0_i32_0 : i32, i32
  }
  func.func @transform_5(%arg0: i32, %arg1: i32) -> (i32, i32) {
    %c0_i32 = arith.constant 0 : i32
    %c0_i32_0 = arith.constant 0 : i32
    return %arg0, %c0_i32 : i32, i32
  }
}

module attributes {stable_mosaic.version = 11 : i64} {
  func.func @_lln_kernel(%arg0: i32, %arg1: i32, %arg2: memref<16x16xf32, #tpu.memory_space<vmem>>, %arg3: memref<16x128xf32, #tpu.memory_space<vmem>>, %arg4: memref<1x128xf32, #tpu.memory_space<vmem>>, %arg5: memref<1x128xf32, #tpu.memory_space<vmem>>, %arg6: memref<1x128xf32, #tpu.memory_space<vmem>>, %arg7: memref<16x128xf32, #tpu.memory_space<vmem>>, %arg8: memref<16x128xf32, #tpu.memory_space<vmem>>) attributes {dimension_semantics = [#tpu.dimension_semantics<parallel>, #tpu.dimension_semantics<arbitrary>], iteration_bounds = array<i64: 1, 1>, scalar_prefetch = 0 : i64, scratch_operands = 1 : i64, tpu.core_type = #tpu.core_type<tc>, window_params = [{transform_indices = @transform_0, window_bounds = array<i64: 16, 16>}, {transform_indices = @transform_1, window_bounds = array<i64: 16, 128>}, {pipeline_mode = #tpu.pipeline_mode<synchronous>, transform_indices = @transform_2, window_bounds = array<i64: 1, 128>}, {pipeline_mode = #tpu.pipeline_mode<synchronous>, transform_indices = @transform_3, window_bounds = array<i64: 1, 128>}, {pipeline_mode = #tpu.pipeline_mode<synchronous>, transform_indices = @transform_4, window_bounds = array<i64: 1, 128>}, {transform_indices = @transform_5, window_bounds = array<i64: 16, 128>}]} {
    %c0_i32 = arith.constant 0 : i32
    %0 = arith.cmpi eq, %arg1, %c0_i32 : i32
    %1 = arith.extui %0 : i1 to i32
    %c0_i32_0 = arith.constant 0 : i32
    %2 = arith.cmpi ne, %1, %c0_i32_0 : i32
    scf.if %2 {
      %cst_10 = arith.constant 0.000000e+00 : f32
      %12 = vector.broadcast %cst_10 : f32 to vector<16x128xf32>
      %c0_11 = arith.constant 0 : index
      %c0_12 = arith.constant 0 : index
      %13 = vector.load %arg8[%c0_11, %c0_12] : memref<16x128xf32, #tpu.memory_space<vmem>>, vector<16x128xf32>
      tpu.vector_store %arg8[%c0_11, %c0_12], %12 {strides = array<i32>} : memref<16x128xf32, #tpu.memory_space<vmem>>, vector<16x128xf32>,
    } else {
    }
    %c0 = arith.constant 0 : index
    %c0_1 = arith.constant 0 : index
    %3 = vector.load %arg8[%c0, %c0_1] : memref<16x128xf32, #tpu.memory_space<vmem>>, vector<16x128xf32>
    %c0_2 = arith.constant 0 : index
    %c0_3 = arith.constant 0 : index
    %4 = vector.load %arg2[%c0_2, %c0_3] : memref<16x16xf32, #tpu.memory_space<vmem>>, vector<16x16xf32>
    %c0_4 = arith.constant 0 : index
    %c0_5 = arith.constant 0 : index
    %5 = vector.load %arg3[%c0_4, %c0_5] : memref<16x128xf32, #tpu.memory_space<vmem>>, vector<16x128xf32>
    %cst = arith.constant dense<0.000000e+00> : vector<16x128xf32>
    %6 = tpu.matmul %4, %5, %cst {dimension_numbers = #tpu.dot_dimension_numbers<[1], [0], [0], [1], [0, 0, 1, 1], [], []>} : vector<16x16xf32>, vector<16x128xf32>, vector<16x128xf32> -> vector<16x128xf32>
    %7 = arith.addf %3, %6 : vector<16x128xf32>
    %c0_6 = arith.constant 0 : index
    %c0_7 = arith.constant 0 : index
    %8 = vector.load %arg8[%c0_6, %c0_7] : memref<16x128xf32, #tpu.memory_space<vmem>>, vector<16x128xf32>
    tpu.vector_store %arg8[%c0_6, %c0_7], %7 {strides = array<i32>} : memref<16x128xf32, #tpu.memory_space<vmem>>, vector<16x128xf32>,
    %c0_i32_8 = arith.constant 0 : i32
    %9 = arith.cmpi eq, %arg1, %c0_i32_8 : i32
    %10 = arith.extui %9 : i1 to i32
    %c0_i32_9 = arith.constant 0 : i32
    %11 = arith.cmpi ne, %10, %c0_i32_9 : i32
    scf.if %11 {
      %c0_10 = arith.constant 0 : index
      %c0_11 = arith.constant 0 : index
      %12 = vector.load %arg8[%c0_10, %c0_11] : memref<16x128xf32, #tpu.memory_space<vmem>>, vector<16x128xf32>
      %c0_12 = arith.constant 0 : index
      %c0_13 = arith.constant 0 : index
      %13 = vector.load %arg4[%c0_12, %c0_13] : memref<1x128xf32, #tpu.memory_space<vmem>>, vector<1x128xf32>
      %14 = vector.broadcast %13 : vector<1x128xf32> to vector<16x128xf32>
      %15 = arith.addf %12, %14 : vector<16x128xf32>
      %cst_14 = arith.constant dense<0.000000e+00> : vector<16xf32>
      %16 = vector.multi_reduction <add>, %15, %cst_14 [1] : vector<16x128xf32> to vector<16xf32>
      %17 = vector.shape_cast %16 : vector<16xf32> to vector<16x1xf32>
      %cst_15 = arith.constant 3.125000e-02 : f32
      %18 = vector.broadcast %cst_15 : f32 to vector<16x1xf32>
      %19 = arith.mulf %17, %18 : vector<16x1xf32>
      %20 = vector.broadcast %19 : vector<16x1xf32> to vector<16x128xf32>
      %21 = arith.subf %15, %20 : vector<16x128xf32>
      %22 = tpu.iota {dimensions = array<i32: 1>} : vector<16x128xi32>
      %c32_i32 = arith.constant 32 : i32
      %23 = vector.broadcast %c32_i32 : i32 to vector<16x128xi32>
      %24 = arith.cmpi slt, %22, %23 : vector<16x128xi32>
      %cst_16 = arith.constant 0.000000e+00 : f32
      %25 = vector.broadcast %cst_16 : f32 to vector<16x128xf32>
      %26 = arith.select %24, %21, %25 : vector<16x128xi1>, vector<16x128xf32>
      %27 = arith.mulf %26, %26 : vector<16x128xf32>
      %cst_17 = arith.constant dense<0.000000e+00> : vector<16xf32>
      %28 = vector.multi_reduction <add>, %27, %cst_17 [1] : vector<16x128xf32> to vector<16xf32>
      %29 = vector.shape_cast %28 : vector<16xf32> to vector<16x1xf32>
      %cst_18 = arith.constant 3.125000e-02 : f32
      %30 = vector.broadcast %cst_18 : f32 to vector<16x1xf32>
      %31 = arith.mulf %29, %30 : vector<16x1xf32>
      %cst_19 = arith.constant 9.99999974E-6 : f32
      %32 = vector.broadcast %cst_19 : f32 to vector<16x1xf32>
      %33 = arith.addf %31, %32 : vector<16x1xf32>
      %34 = math.rsqrt %33 : vector<16x1xf32>
      %35 = vector.broadcast %34 : vector<16x1xf32> to vector<16x128xf32>
      %36 = arith.mulf %26, %35 : vector<16x128xf32>
      %c0_20 = arith.constant 0 : index
      %c0_21 = arith.constant 0 : index
      %37 = vector.load %arg5[%c0_20, %c0_21] : memref<1x128xf32, #tpu.memory_space<vmem>>, vector<1x128xf32>
      %38 = vector.broadcast %37 : vector<1x128xf32> to vector<16x128xf32>
      %39 = arith.mulf %36, %38 : vector<16x128xf32>
      %c0_22 = arith.constant 0 : index
      %c0_23 = arith.constant 0 : index
      %40 = vector.load %arg6[%c0_22, %c0_23] : memref<1x128xf32, #tpu.memory_space<vmem>>, vector<1x128xf32>
      %41 = vector.broadcast %40 : vector<1x128xf32> to vector<16x128xf32>
      %42 = arith.addf %39, %41 : vector<16x128xf32>
      %c0_24 = arith.constant 0 : index
      %c0_25 = arith.constant 0 : index
      %43 = vector.load %arg7[%c0_24, %c0_25] : memref<16x128xf32, #tpu.memory_space<vmem>>, vector<16x128xf32>
      tpu.vector_store %arg7[%c0_24, %c0_25], %42 {strides = array<i32>} : memref<16x128xf32, #tpu.memory_space<vmem>>, vector<16x128xf32>,
    } else {
    }
    return
  }
  func.func @transform_0(%arg0: i32, %arg1: i32) -> (i32, i32) {
    %c0_i32 = arith.constant 0 : i32
    return %arg0, %arg1 : i32, i32
  }
  func.func @transform_1(%arg0: i32, %arg1: i32) -> (i32, i32) {
    %c0_i32 = arith.constant 0 : i32
    %c0_i32_0 = arith.constant 0 : i32
    return %arg1, %c0_i32 : i32, i32
  }
  func.func @transform_2(%arg0: i32, %arg1: i32) -> (i32, i32) {
    %c0_i32 = arith.constant 0 : i32
    %c0_i32_0 = arith.constant 0 : i32
    %c0_i32_1 = arith.constant 0 : i32
    return %c0_i32, %c0_i32_0 : i32, i32
  }
  func.func @transform_3(%arg0: i32, %arg1: i32) -> (i32, i32) {
    %c0_i32 = arith.constant 0 : i32
    %c0_i32_0 = arith.constant 0 : i32
    %c0_i32_1 = arith.constant 0 : i32
    return %c0_i32, %c0_i32_0 : i32, i32
  }
  func.func @transform_4(%arg0: i32, %arg1: i32) -> (i32, i32) {
    %c0_i32 = arith.constant 0 : i32
    %c0_i32_0 = arith.constant 0 : i32
    %c0_i32_1 = arith.constant 0 : i32
    return %c0_i32, %c0_i32_0 : i32, i32
  }
  func.func @transform_5(%arg0: i32, %arg1: i32) -> (i32, i32) {
    %c0_i32 = arith.constant 0 : i32
    %c0_i32_0 = arith.constant 0 : i32
    return %arg0, %c0_i32 : i32, i32
  }
}

</mosaic_0001>

<llo_original>
// kernel: lln_forward.1
$region0: #{lln_forward.1}
  #allocation0 [shape = 'u32[]', space=smem, size = 0x4, offset = 0x4, fixed_abs, tag = 'smem constant byte address 0x4 - core index']
  #allocation1 [shape = 'u32[144,128]{1,0:T(1,128)}', space=vmem, size = 0x12000, scoped, tag = 'internal scratch']
  #allocation2 [shape = 'f32[16,128]{1,0:T(8,128)}', space=vmem, size = 0x2000, scoped, tag = 'scratch operand']
  %s0 = inlined_call_operand.vmem [shape: f32[16,16], index: 0, kind: input, shape index: {}]
  %s1 = inlined_call_operand.vmem [shape: f32[16,128], index: 1, kind: input, shape index: {}]
  %s2 = inlined_call_operand.vmem [shape: f32[1,128], index: 2, kind: input, shape index: {}]
  %s3 = inlined_call_operand.vmem [shape: f32[1,128], index: 3, kind: input, shape index: {}]
  %s4 = inlined_call_operand.vmem [shape: f32[1,128], index: 4, kind: input, shape index: {}]
  %s5 = inlined_call_operand.vmem [shape: f32[16,128], index: 5, kind: output, shape index: {}]
  %s6 = sld [smem:[#allocation0]]
  $region38: #{lln_forward.1} parent=0
    _
  %s8 = ssub.s32 1, %s6
  %s9 = scalar_select 0, %s8, %s6
  // Predicated region
  $region2: #{lln_forward.1} parent=0 // pred_check
    _
  $region3: #{lln_forward.1} parent=0 // pred_check_branch
    %11 = sbr.rel (0) target = $region5
  $region4: #{lln_forward.1} parent=0 // pred_region
    _
  $region5: #{lln_forward.1} parent=0 // pred_fallthru
    _
  // Predicated region
  $region6: #{lln_forward.1} parent=0 // pred_check
    _
  $region7: #{lln_forward.1} parent=0 // pred_check_branch
    %13 = sbr.rel (0) target = $region9
  $region8: #{lln_forward.1} parent=0 // pred_region
    _
  $region9: #{lln_forward.1} parent=0 // pred_fallthru
    _
  // Predicated region
  $region10: #{lln_forward.1} parent=0 // pred_check
    _
  $region11: #{lln_forward.1} parent=0 // pred_check_branch
    %15 = sbr.rel (0) target = $region13
  $region12: #{lln_forward.1} parent=0 // pred_region
    _
  $region13: #{lln_forward.1} parent=0 // pred_fallthru
    _
  // Predicated region
  $region14: #{lln_forward.1} parent=0 // pred_check
    _
  $region15: #{lln_forward.1} parent=0 // pred_check_branch
    %17 = sbr.rel (0) target = $region17
  $region16: #{lln_forward.1} parent=0 // pred_region
    _
  $region17: #{lln_forward.1} parent=0 // pred_fallthru
    _
  // Predicated region
  $region18: #{lln_forward.1} parent=0 // pred_check
    _
  $region19: #{lln_forward.1} parent=0 // pred_check_branch
    %19 = sbr.rel (0) target = $region21
  $region20: #{lln_forward.1} parent=0 // pred_region
    _
  $region21: #{lln_forward.1} parent=0 // pred_fallthru
    _
  %p20 = scmp.eq.s32.totalorder 0, 0
  // Predicated region
  $region22: #{lln_forward.1} parent=0 // pred_check
    %p21 = pneg %p20
  $region23: #{lln_forward.1} parent=0 // pred_check_branch
    %23 = sbr.rel (%p21) target = $region25
  $region24: #{lln_forward.1} parent=0 // pred_region
    %24 = vst [vmem:[#allocation2] sm:$0xff] 0.0
    %25 = vst [vmem:[#allocation2 + $0x8] sm:$0xff] 0.0
  $region25: #{lln_forward.1} parent=0 // pred_fallthru
    _
  %v26 = vld [vmem:[#allocation2] sm:$0xff]
  %v27 = vld [vmem:[#allocation2 + $0x8] sm:$0xff]
  %v28 = vld [vmem:[%s0] sm:$0xff]
  %v29 = vld [vmem:[%s0 + $0x8] sm:$0xff]
  %v30 = vld [vmem:[%s1] sm:$0xff]
  %v31 = vld [vmem:[%s1 + $0x8] sm:$0xff]
  %vm32 = vcmask 130048
  %v34 = vsel %vm32, %v28, 0
  %v37 = vsel %vm32, %v29, 0
  %39 = vmatprep.subr.mxu0 0.0
  %40 = vmatpush1.msra.mxu0 %v30
  %41 = vmatprep.subr.mxu0 0.0
  %42 = vmatpush1.msra.mxu0 %v31
  %43 = vmatprep.subr.mxu0 0.0
  %44 = vmatpush1.msra.mxu0 0.0
  %45 = vmatprep.subr.mxu0 0.0
  %46 = vmatpush1.msra.mxu0 0.0
  %47 = vmatprep.subr.mxu0 0.0
  %48 = vmatpush1.msra.mxu0 0.0
  %49 = vmatprep.subr.mxu0 0.0
  %50 = vmatpush1.msra.mxu0 0.0
  %51 = vmatprep.subr.mxu0 0.0
  %52 = vmatpush1.msra.mxu0 0.0
  %53 = vmatprep.subr.mxu0 0.0
  %54 = vmatpush1.msra.mxu0 0.0
  %55 = vmatprep.subr.mxu0 0.0
  %56 = vmatpush1.msra.mxu0 0.0
  %57 = vmatprep.subr.mxu0 0.0
  %58 = vmatpush1.msra.mxu0 0.0
  %59 = vmatprep.subr.mxu0 0.0
  %60 = vmatpush1.msra.mxu0 0.0
  %61 = vmatprep.subr.mxu0 0.0
  %62 = vmatpush1.msra.mxu0 0.0
  %63 = vmatprep.subr.mxu0 0.0
  %64 = vmatpush1.msra.mxu0 0.0
  %65 = vmatprep.subr.mxu0 0.0
  %66 = vmatpush1.msra.mxu0 0.0
  %67 = vmatprep.subr.mxu0 0.0
  %68 = vmatpush1.msra.mxu0 0.0
  %69 = vmatprep.subr.mxu0 0.0
  %70 = vmatpush1.msra.mxu0 0.0
  %71 = vmatprep.subr.mxu0 0.0
  %72 = vmatpush1.msra.mxu0 0.0
  %73 = vmatprep.subr.mxu0 0.0
  %74 = vmatpush1.msra.mxu0 0.0
  %75 = vmatprep.subr.mxu0 0.0
  %76 = vmatpush1.msra.mxu0 0.0
  %77 = vmatprep.subr.mxu0 0.0
  %78 = vmatpush1.msra.mxu0 0.0
  %79 = vmatprep.subr.mxu0 0.0
  %80 = vmatpush1.msra.mxu0 0.0
  %81 = vmatprep.subr.mxu0 0.0
  %82 = vmatpush1.msra.mxu0 0.0
  %83 = vmatprep.subr.mxu0 0.0
  %84 = vmatpush1.msra.mxu0 0.0
  %85 = vmatprep.subr.mxu0 0.0
  %86 = vmatpush1.msra.mxu0 0.0
  %87 = vmatprep.subr.mxu0 0.0
  %88 = vmatpush1.msra.mxu0 0.0
  %89 = vmatprep.subr.mxu0 0.0
  %90 = vmatpush1.msra.mxu0 0.0
  %91 = vmatprep.subr.mxu0 0.0
  %92 = vmatpush1.msra.mxu0 0.0
  %93 = vmatprep.subr.mxu0 0.0
  %94 = vmatpush1.msra.mxu0 0.0
  %95 = vmatprep.subr.mxu0 0.0
  %96 = vmatpush1.msra.mxu0 0.0
  %97 = vmatprep.subr.mxu0 0.0
  %98 = vmatpush1.msra.mxu0 0.0
  %99 = vmatprep.subr.mxu0 0.0
  %100 = vmatpush1.msra.mxu0 0.0
  %101 = vmatprep.subr.mxu0 0.0
  %102 = vmatpush1.msra.mxu0 0.0
  %103 = vmatprep.mubr.f32.mxu0 0.0
  %104 = vmatmul.mubr.f32.gmra.mrb[0].mxu0 %v34
  %v105 = vpop.f32.mrb[0].mxu0
  %v106 = vadd.f32 0.0, %v105
  %v107 = vpop.f32.mrb[0].mxu0
  %108 = vmatprep.mubr.f32.mxu0 0.0
  %109 = vmatmul.mubr.f32.gmra.mrb[0].mxu0 %v37
  %v110 = vpop.f32.mrb[0].mxu0
  %v111 = vadd.f32 0.0, %v110
  %v112 = vpop.f32.mrb[0].mxu0
  %113 = vdwg.mxu0
  %v114 = vadd.f32 %v26, %v106
  %v115 = vadd.f32 %v27, %v111
  %116 = vst [vmem:[#allocation2] sm:$0xff] %v114
  %117 = vst [vmem:[#allocation2 + $0x8] sm:$0xff] %v115
  // Predicated region
  $region26: #{lln_forward.1} parent=0 // pred_check
    %p118 = pneg %p20
  $region27: #{lln_forward.1} parent=0 // pred_check_branch
    %120 = sbr.rel (%p118) target = $region29
  $region28: #{lln_forward.1} parent=0 // pred_region
    %v121 = vld [vmem:[#allocation2] sm:$0xff]
    %v122 = vld [vmem:[#allocation2 + $0x8] sm:$0xff]
    %v123 = vld [vmem:[%s2] sm:$0x1]
    %v125 = vlaneseq
    %v126 = vshrl.u32 %v125, 7
    %v127 = vsub.s32 0, %v126
    %v128 = vrot.slane %v123, %v127
    %v130 = vadd.f32 %v121, %v128
    %v131 = vadd.f32 %v122, %v128
    %132 = vadd.xlane.f32.xlu0 %v130
    %v133 = vpop.xlane.xlu0 %132
    %134 = vadd.xlane.f32.xlu0 %v131
    %v135 = vpop.xlane.xlu0 %134
    %v136 = vmul.f32 %v133, 0.03125
    %v137 = vmul.f32 %v135, 0.03125
    %v138 = vsub.f32 %v130, %v136
    %v139 = vsub.f32 %v131, %v137
    %v140 = vlaneseq
    %v141 = vand.u32 %v140, 127
    %vm142 = vcmp.lt.s32.totalorder %v141, 32
    %v143 = vsel %vm142, %v138, 0.0
    %v144 = vsel %vm142, %v139, 0.0
    %v145 = vmul.f32 %v143, %v143
    %v146 = vmul.f32 %v144, %v144
    %147 = vadd.xlane.f32.xlu0 %v145
    %v148 = vpop.xlane.xlu0 %147
    %149 = vadd.xlane.f32.xlu0 %v146
    %v150 = vpop.xlane.xlu0 %149
    %v151 = vmul.f32 %v148, 0.03125
    %v152 = vmul.f32 %v150, 0.03125
    %v153 = vadd.f32 %v151, 1e-05
    %v154 = vadd.f32 %v152, 1e-05
    %v155 = vrsqrt.pop %v153
    %v156 = vrsqrt.pop %v154
    %v157 = vmul.f32 %v143, %v155
    %v158 = vmul.f32 %v144, %v156
    %v159 = vld [vmem:[%s3] sm:$0x1]
    %v161 = vlaneseq
    %v162 = vshrl.u32 %v161, 7
    %v163 = vsub.s32 0, %v162
    %v164 = vrot.slane %v159, %v163
    %v166 = vmul.f32 %v157, %v164
    %v167 = vmul.f32 %v158, %v164
    %v168 = vld [vmem:[%s4] sm:$0x1]
    %v170 = vlaneseq
    %v171 = vshrl.u32 %v170, 7
    %v172 = vsub.s32 0, %v171
    %v173 = vrot.slane %v168, %v172
    %v175 = vadd.f32 %v166, %v173
    %v176 = vadd.f32 %v167, %v173
    %177 = vst [vmem:[%s5] sm:$0xff] %v175
    %178 = vst [vmem:[%s5 + $0x8] sm:$0xff] %v176
  $region29: #{lln_forward.1} parent=0 // pred_fallthru
    _
  // Predicated region
  $region30: #{lln_forward.1} parent=0 // pred_check
    _
  $region31: #{lln_forward.1} parent=0 // pred_check_branch
    %180 = sbr.rel (0) target = $region33
  $region32: #{lln_forward.1} parent=0 // pred_region
    _
  $region33: #{lln_forward.1} parent=0 // pred_fallthru
    _
  // Predicated region
  $region34: #{lln_forward.1} parent=0 // pred_check
    _
  $region35: #{lln_forward.1} parent=0 // pred_check_branch
    %182 = sbr.rel (0) target = $region37
  $region36: #{lln_forward.1} parent=0 // pred_region
    _
  $region37: #{lln_forward.1} parent=0 // pred_fallthru
    _

// kernel: lln_forward.1
$region0: #{lln_forward.1}
  #allocation0 [shape = 'u32[]', space=smem, size = 0x4, offset = 0x4, fixed_abs, tag = 'smem constant byte address 0x4 - core index']
  #allocation1 [shape = 'u32[144,128]{1,0:T(1,128)}', space=vmem, size = 0x12000, scoped, tag = 'internal scratch']
  #allocation2 [shape = 'f32[16,128]{1,0:T(8,128)}', space=vmem, size = 0x2000, scoped, tag = 'scratch operand']
  %s0 = inlined_call_operand.vmem [shape: f32[16,16], index: 0, kind: input, shape index: {}]
  %s1 = inlined_call_operand.vmem [shape: f32[16,128], index: 1, kind: input, shape index: {}]
  %s2 = inlined_call_operand.vmem [shape: f32[1,128], index: 2, kind: input, shape index: {}]
  %s3 = inlined_call_operand.vmem [shape: f32[1,128], index: 3, kind: input, shape index: {}]
  %s4 = inlined_call_operand.vmem [shape: f32[1,128], index: 4, kind: input, shape index: {}]
  %s5 = inlined_call_operand.vmem [shape: f32[16,128], index: 5, kind: output, shape index: {}]
  %s6 = sld [smem:[#allocation0]]
  $region38: #{lln_forward.1} parent=0
    _
  %s8 = ssub.s32 1, %s6
  %s9 = scalar_select 0, %s8, %s6
  // Predicated region
  $region2: #{lln_forward.1} parent=0 // pred_check
    _
  $region3: #{lln_forward.1} parent=0 // pred_check_branch
    %11 = sbr.rel (0) target = $region5
  $region4: #{lln_forward.1} parent=0 // pred_region
    _
  $region5: #{lln_forward.1} parent=0 // pred_fallthru
    _
  // Predicated region
  $region6: #{lln_forward.1} parent=0 // pred_check
    _
  $region7: #{lln_forward.1} parent=0 // pred_check_branch
    %13 = sbr.rel (0) target = $region9
  $region8: #{lln_forward.1} parent=0 // pred_region
    _
  $region9: #{lln_forward.1} parent=0 // pred_fallthru
    _
  // Predicated region
  $region10: #{lln_forward.1} parent=0 // pred_check
    _
  $region11: #{lln_forward.1} parent=0 // pred_check_branch
    %15 = sbr.rel (0) target = $region13
  $region12: #{lln_forward.1} parent=0 // pred_region
    _
  $region13: #{lln_forward.1} parent=0 // pred_fallthru
    _
  // Predicated region
  $region14: #{lln_forward.1} parent=0 // pred_check
    _
  $region15: #{lln_forward.1} parent=0 // pred_check_branch
    %17 = sbr.rel (0) target = $region17
  $region16: #{lln_forward.1} parent=0 // pred_region
    _
  $region17: #{lln_forward.1} parent=0 // pred_fallthru
    _
  // Predicated region
  $region18: #{lln_forward.1} parent=0 // pred_check
    _
  $region19: #{lln_forward.1} parent=0 // pred_check_branch
    %19 = sbr.rel (0) target = $region21
  $region20: #{lln_forward.1} parent=0 // pred_region
    _
  $region21: #{lln_forward.1} parent=0 // pred_fallthru
    _
  %p20 = scmp.eq.s32.totalorder 0, 0
  // Predicated region
  $region22: #{lln_forward.1} parent=0 // pred_check
    %p21 = pneg %p20
  $region23: #{lln_forward.1} parent=0 // pred_check_branch
    %23 = sbr.rel (%p21) target = $region25
  $region24: #{lln_forward.1} parent=0 // pred_region
    %24 = vst [vmem:[#allocation2] sm:$0xff] 0.0
    %25 = vst [vmem:[#allocation2 + $0x8] sm:$0xff] 0.0
  $region25: #{lln_forward.1} parent=0 // pred_fallthru
    _
  %v26 = vld [vmem:[#allocation2] sm:$0xff]
  %v27 = vld [vmem:[#allocation2 + $0x8] sm:$0xff]
  %v28 = vld [vmem:[%s0] sm:$0xff]
  %v29 = vld [vmem:[%s0 + $0x8] sm:$0xff]
  %v30 = vld [vmem:[%s1] sm:$0xff]
  %v31 = vld [vmem:[%s1 + $0x8] sm:$0xff]
  %vm32 = vcmask 130048
  %v34 = vsel %vm32, %v28, 0
  %v37 = vsel %vm32, %v29, 0
  %39 = vmatprep.subr.mxu0 0.0
  %40 = vmatpush1.msra.mxu0 %v30
  %41 = vmatprep.subr.mxu0 0.0
  %42 = vmatpush1.msra.mxu0 %v31
  %43 = vmatprep.subr.mxu0 0.0
  %44 = vmatpush1.msra.mxu0 0.0
  %45 = vmatprep.subr.mxu0 0.0
  %46 = vmatpush1.msra.mxu0 0.0
  %47 = vmatprep.subr.mxu0 0.0
  %48 = vmatpush1.msra.mxu0 0.0
  %49 = vmatprep.subr.mxu0 0.0
  %50 = vmatpush1.msra.mxu0 0.0
  %51 = vmatprep.subr.mxu0 0.0
  %52 = vmatpush1.msra.mxu0 0.0
  %53 = vmatprep.subr.mxu0 0.0
  %54 = vmatpush1.msra.mxu0 0.0
  %55 = vmatprep.subr.mxu0 0.0
  %56 = vmatpush1.msra.mxu0 0.0
  %57 = vmatprep.subr.mxu0 0.0
  %58 = vmatpush1.msra.mxu0 0.0
  %59 = vmatprep.subr.mxu0 0.0
  %60 = vmatpush1.msra.mxu0 0.0
  %61 = vmatprep.subr.mxu0 0.0
  %62 = vmatpush1.msra.mxu0 0.0
  %63 = vmatprep.subr.mxu0 0.0
  %64 = vmatpush1.msra.mxu0 0.0
  %65 = vmatprep.subr.mxu0 0.0
  %66 = vmatpush1.msra.mxu0 0.0
  %67 = vmatprep.subr.mxu0 0.0
  %68 = vmatpush1.msra.mxu0 0.0
  %69 = vmatprep.subr.mxu0 0.0
  %70 = vmatpush1.msra.mxu0 0.0
  %71 = vmatprep.subr.mxu0 0.0
  %72 = vmatpush1.msra.mxu0 0.0
  %73 = vmatprep.subr.mxu0 0.0
  %74 = vmatpush1.msra.mxu0 0.0
  %75 = vmatprep.subr.mxu0 0.0
  %76 = vmatpush1.msra.mxu0 0.0
  %77 = vmatprep.subr.mxu0 0.0
  %78 = vmatpush1.msra.mxu0 0.0
  %79 = vmatprep.subr.mxu0 0.0
  %80 = vmatpush1.msra.mxu0 0.0
  %81 = vmatprep.subr.mxu0 0.0
  %82 = vmatpush1.msra.mxu0 0.0
  %83 = vmatprep.subr.mxu0 0.0
  %84 = vmatpush1.msra.mxu0 0.0
  %85 = vmatprep.subr.mxu0 0.0
  %86 = vmatpush1.msra.mxu0 0.0
  %87 = vmatprep.subr.mxu0 0.0
  %88 = vmatpush1.msra.mxu0 0.0
  %89 = vmatprep.subr.mxu0 0.0
  %90 = vmatpush1.msra.mxu0 0.0
  %91 = vmatprep.subr.mxu0 0.0
  %92 = vmatpush1.msra.mxu0 0.0
  %93 = vmatprep.subr.mxu0 0.0
  %94 = vmatpush1.msra.mxu0 0.0
  %95 = vmatprep.subr.mxu0 0.0
  %96 = vmatpush1.msra.mxu0 0.0
  %97 = vmatprep.subr.mxu0 0.0
  %98 = vmatpush1.msra.mxu0 0.0
  %99 = vmatprep.subr.mxu0 0.0
  %100 = vmatpush1.msra.mxu0 0.0
  %101 = vmatprep.subr.mxu0 0.0
  %102 = vmatpush1.msra.mxu0 0.0
  %103 = vmatprep.mubr.f32.mxu0 0.0
  %104 = vmatmul.mubr.f32.gmra.mrb[0].mxu0 %v34
  %v105 = vpop.f32.mrb[0].mxu0
  %v106 = vadd.f32 0.0, %v105
  %v107 = vpop.f32.mrb[0].mxu0
  %108 = vmatprep.mubr.f32.mxu0 0.0
  %109 = vmatmul.mubr.f32.gmra.mrb[0].mxu0 %v37
  %v110 = vpop.f32.mrb[0].mxu0
  %v111 = vadd.f32 0.0, %v110
  %v112 = vpop.f32.mrb[0].mxu0
  %113 = vdwg.mxu0
  %v114 = vadd.f32 %v26, %v106
  %v115 = vadd.f32 %v27, %v111
  %116 = vst [vmem:[#allocation2] sm:$0xff] %v114
  %117 = vst [vmem:[#allocation2 + $0x8] sm:$0xff] %v115
  // Predicated region
  $region26: #{lln_forward.1} parent=0 // pred_check
    %p118 = pneg %p20
  $region27: #{lln_forward.1} parent=0 // pred_check_branch
    %120 = sbr.rel (%p118) target = $region29
  $region28: #{lln_forward.1} parent=0 // pred_region
    %v121 = vld [vmem:[#allocation2] sm:$0xff]
    %v122 = vld [vmem:[#allocation2 + $0x8] sm:$0xff]
    %v123 = vld [vmem:[%s2] sm:$0x1]
    %v125 = vlaneseq
    %v126 = vshrl.u32 %v125, 7
    %v127 = vsub.s32 0, %v126
    %v128 = vrot.slane %v123, %v127
    %v130 = vadd.f32 %v121, %v128
    %v131 = vadd.f32 %v122, %v128
    %132 = vadd.xlane.f32.xlu0 %v130
    %v133 = vpop.xlane.xlu0 %132
    %134 = vadd.xlane.f32.xlu0 %v131
    %v135 = vpop.xlane.xlu0 %134
    %v136 = vmul.f32 %v133, 0.03125
    %v137 = vmul.f32 %v135, 0.03125
    %v138 = vsub.f32 %v130, %v136
    %v139 = vsub.f32 %v131, %v137
    %v140 = vlaneseq
    %v141 = vand.u32 %v140, 127
    %vm142 = vcmp.lt.s32.totalorder %v141, 32
    %v143 = vsel %vm142, %v138, 0.0
    %v144 = vsel %vm142, %v139, 0.0
    %v145 = vmul.f32 %v143, %v143
    %v146 = vmul.f32 %v144, %v144
    %147 = vadd.xlane.f32.xlu0 %v145
    %v148 = vpop.xlane.xlu0 %147
    %149 = vadd.xlane.f32.xlu0 %v146
    %v150 = vpop.xlane.xlu0 %149
    %v151 = vmul.f32 %v148, 0.03125
    %v152 = vmul.f32 %v150, 0.03125
    %v153 = vadd.f32 %v151, 1e-05
    %v154 = vadd.f32 %v152, 1e-05
    %v155 = vrsqrt.pop %v153
    %v156 = vrsqrt.pop %v154
    %v157 = vmul.f32 %v143, %v155
    %v158 = vmul.f32 %v144, %v156
    %v159 = vld [vmem:[%s3] sm:$0x1]
    %v161 = vlaneseq
    %v162 = vshrl.u32 %v161, 7
    %v163 = vsub.s32 0, %v162
    %v164 = vrot.slane %v159, %v163
    %v166 = vmul.f32 %v157, %v164
    %v167 = vmul.f32 %v158, %v164
    %v168 = vld [vmem:[%s4] sm:$0x1]
    %v170 = vlaneseq
    %v171 = vshrl.u32 %v170, 7
    %v172 = vsub.s32 0, %v171
    %v173 = vrot.slane %v168, %v172
    %v175 = vadd.f32 %v166, %v173
    %v176 = vadd.f32 %v167, %v173
    %177 = vst [vmem:[%s5] sm:$0xff] %v175
    %178 = vst [vmem:[%s5 + $0x8] sm:$0xff] %v176
  $region29: #{lln_forward.1} parent=0 // pred_fallthru
    _
  // Predicated region
  $region30: #{lln_forward.1} parent=0 // pred_check
    _
  $region31: #{lln_forward.1} parent=0 // pred_check_branch
    %180 = sbr.rel (0) target = $region33
  $region32: #{lln_forward.1} parent=0 // pred_region
    _
  $region33: #{lln_forward.1} parent=0 // pred_fallthru
    _
  // Predicated region
  $region34: #{lln_forward.1} parent=0 // pred_check
    _
  $region35: #{lln_forward.1} parent=0 // pred_check_branch
    %182 = sbr.rel (0) target = $region37
  $region36: #{lln_forward.1} parent=0 // pred_region
    _
  $region37: #{lln_forward.1} parent=0 // pred_fallthru
    _

</llo_original>
